<compile_context>
chip_gen: v7x
topology: tpu7x:2x2x1
jax: 0.10.0
libtpu: 0.0.40
codegen_flags: <defaults>
</compile_context>

<pallas_src>
import jax
import jax.numpy as jnp
from jax.experimental import pallas as pl
from jax.experimental.pallas import tpu as pltpu

GAMMA = 2        # static, as in the PyTorch module default
NUM_PARTS = 2    # leading 'parallel' grid axis -> split across the 2 TensorCores on v7x


def _choose_block_rows(n, c, itemsize):
    """Tile rows purely from a byte budget (no artificial row cap).

    ~8 MiB per input set (logits tile + lane-padded targets tile).  The pipeline
    double-buffers (~16 MiB of inputs), well inside the explicit 48 MiB VMEM limit
    requested below (v5e/v6e phys 128 MiB, v7x phys 64 MiB).
    """
    budget_bytes = 8 * 1024 * 1024
    bytes_per_row = c * itemsize + 512   # 512 B = (tn,1) int32 targets row padded to 128 lanes
    tn = budget_bytes // max(bytes_per_row, 1)
    tn -= tn % 16                        # sublane-friendly for both f32 (8) and bf16 (16)
    tn = max(int(tn), 16)
    if n <= tn:
        return n                         # single full-extent block (block == full dim is legal)
    return tn


def _make_focal_kernel(n_total, block_rows, tiles_per_part, needs_mask):
    """Streaming kernel: per part, accumulate sum(CE_row) and sum(alpha[target])."""

    def kernel(x_ref, t_ref, a_ref, o_ref, ce_acc, at_acc):
        part = pl.program_id(0)
        j = pl.program_id(1)

        @pl.when(j == 0)
        def _init():
            ce_acc[...] = jnp.zeros_like(ce_acc)
            at_acc[...] = jnp.zeros_like(at_acc)

        x = x_ref[...].astype(jnp.float32)    # (TN, C): native-dtype DMA, f32 in-register
        t = t_ref[...]                        # (TN, 1) int32 targets
        a = a_ref[...]                        # (1, C)  f32 per-class alpha
        rows, C = x.shape

        # target "one-hot" as a boolean mask via broadcasted iota (no gather on TPU)
        classes = jax.lax.broadcasted_iota(jnp.int32, (rows, C), 1)
        hit = classes == t                    # (TN, C) bool

        # row-wise logsumexp
        m = jnp.max(x, axis=-1, keepdims=True)
        lse = m + jnp.log(jnp.sum(jnp.exp(x - m), axis=-1, keepdims=True))  # (TN, 1)

        if needs_mask:
            # mask padded rows of the partial edge tile and the clamped duplicate
            # tiles of the second part (static Python branch: only emitted if needed)
            row_off = (part * tiles_per_part + j) * block_rows
            row_ids = row_off + jax.lax.broadcasted_iota(jnp.int32, (rows, 1), 0)
            valid = row_ids < n_total
            hit = jnp.logical_and(hit, valid)
            lse = jnp.where(valid, lse, 0.0)

        # collapsed tile-level sums (no (TN,1) keepdims intermediates kept around)
        ce_sum = jnp.sum(lse) - jnp.sum(jnp.where(hit, x, 0.0))
        at_sum = jnp.sum(jnp.where(hit, a, 0.0))

        ce_acc[...] += ce_sum
        at_acc[...] += at_sum

        @pl.when(j == pl.num_programs(1) - 1)
        def _finalize():
            # emit this part's two partial sums into lanes 0/1 of a layout-friendly
            # (8,128) output block (lane-dense store, one per part)
            sub = jax.lax.broadcasted_iota(jnp.int32, (8, 128), 0)
            lane = jax.lax.broadcasted_iota(jnp.int32, (8, 128), 1)
            blk = jnp.where(jnp.logical_and(sub == 0, lane == 0), ce_acc[...], 0.0)
            blk = jnp.where(jnp.logical_and(sub == 0, lane == 1), at_acc[...], blk)
            o_ref[...] = blk.reshape(1, 8, 128)

    return kernel


def weighted_focal_loss(logits, targets, alpha, gamma=GAMMA, block_rows=None):
    """logits: (N, C) f32/bf16, targets: (N,) int, alpha: (C,) -> scalar f32."""
    N, C = logits.shape
    t2d = targets.astype(jnp.int32).reshape(N, 1)
    a2d = alpha.astype(jnp.float32).reshape(1, C)

    itemsize = jnp.dtype(logits.dtype).itemsize
    tn = block_rows if block_rows is not None else _choose_block_rows(N, C, itemsize)

    total_tiles = pl.cdiv(N, tn)
    tiles_per_part = pl.cdiv(total_tiles, NUM_PARTS)
    last_block = total_tiles - 1
    needs_mask = (NUM_PARTS * tiles_per_part * tn) > N

    # Clamp logically out-of-range tiles to the last real tile; the kernel's row
    # mask zeroes their contribution, so no HBM out-of-bounds DMA can occur.
    def x_map(part, j):
        return (jnp.minimum(part * tiles_per_part + j, last_block), 0)

    def t_map(part, j):
        return (jnp.minimum(part * tiles_per_part + j, last_block), 0)

    kernel = _make_focal_kernel(N, tn, tiles_per_part, needs_mask)

    cost = pl.CostEstimate(
        flops=int(6 * N * C),
        transcendentals=int(N * C),
        bytes_accessed=int(N * C * itemsize + N * 4 + C * 4 + NUM_PARTS * 8 * 128 * 4),
    )

    partials = pl.pallas_call(
        kernel,
        out_shape=jax.ShapeDtypeStruct((NUM_PARTS, 8, 128), jnp.float32),
        grid_spec=pltpu.PrefetchScalarGridSpec(
            num_scalar_prefetch=0,
            grid=(NUM_PARTS, tiles_per_part),
            in_specs=[
                pl.BlockSpec((tn, C), x_map),            # logits tile (native dtype)
                pl.BlockSpec((tn, 1), t_map),            # targets tile
                pl.BlockSpec((1, C), lambda p, j: (0, 0)),   # alpha (grid-invariant)
            ],
            out_specs=pl.BlockSpec((1, 8, 128), lambda p, j: (p, 0, 0)),
            scratch_shapes=[
                pltpu.VMEM((1, 1), jnp.float32),   # per-part sum of per-row CE
                pltpu.VMEM((1, 1), jnp.float32),   # per-part sum of alpha[target]
            ],
        ),
        compiler_params=pltpu.CompilerParams(
            dimension_semantics=("parallel", "arbitrary"),
            vmem_limit_bytes=48 * 1024 * 1024,
        ),
        cost_estimate=cost,
    )(logits, t2d, a2d)

    # cheap scalar finalize in the wrapper; also combines the per-core partials
    ce_total = jnp.sum(partials[:, 0, 0])
    at_total = jnp.sum(partials[:, 0, 1])
    ce = ce_total / N
    at_mean = at_total / N
    pt = jnp.exp(-ce)
    return at_mean * (1.0 - pt) ** gamma * ce


def _reference(logits, targets, alpha, gamma=GAMMA):
    # pure-JAX reference mirroring the PyTorch code
    logits = logits.astype(jnp.float32)
    lse = jax.nn.logsumexp(logits, axis=-1)
    tgt = jnp.take_along_axis(logits, targets[:, None].astype(jnp.int32), axis=-1)[:, 0]
    ce = jnp.mean(lse - tgt)
    at = alpha.astype(jnp.float32)[targets]
    pt = jnp.exp(-ce)
    return jnp.mean(at * (1.0 - pt) ** gamma * ce)


if __name__ == "__main__":
    key = jax.random.PRNGKey(0)
    k1, k2, k3, k4 = jax.random.split(key, 4)

    # --- case 1: small single-tile, f32 logits ---
    N1, C1 = 8, 32
    logits1 = jax.random.normal(k1, (N1, C1), dtype=jnp.float32)
    targets1 = jax.random.randint(k2, (N1,), 0, C1, dtype=jnp.int32)
    alpha1 = jnp.linspace(0.25, 0.75, C1, dtype=jnp.float32)

    loss1 = jax.block_until_ready(weighted_focal_loss(logits1, targets1, alpha1))
    ref1 = _reference(logits1, targets1, alpha1)
    assert jnp.allclose(loss1, ref1, rtol=1e-5, atol=1e-5), (loss1, ref1)

    # --- case 2: multi-tile (2 parts x 2 tiles) with a partial last tile and a
    #     fully out-of-range clamped tile, bf16 logits ---
    N2, C2 = 40, 32
    logits2 = jax.random.normal(k3, (N2, C2), dtype=jnp.float32).astype(jnp.bfloat16)
    targets2 = jax.random.randint(k4, (N2,), 0, C2, dtype=jnp.int32)
    alpha2 = jnp.linspace(0.1, 0.9, C2, dtype=jnp.float32)

    loss2 = jax.block_until_ready(
        weighted_focal_loss(logits2, targets2, alpha2, block_rows=16))
    ref2 = _reference(logits2, targets2, alpha2)  # same f32-after-upcast math
    assert jnp.allclose(loss2, ref2, rtol=1e-5, atol=1e-5), (loss2, ref2)

    print("KERNEL_OK")
</pallas_src>

<mosaic_0001>
module attributes {stable_mosaic.version = 11 : i64} {
  func.func @kernel(%arg0: i32, %arg1: i32, %arg2: memref<8x32xf32, #tpu.memory_space<vmem>>, %arg3: memref<8x1xi32, #tpu.memory_space<vmem>>, %arg4: memref<1x32xf32, #tpu.memory_space<vmem>>, %arg5: memref<1x8x128xf32, #tpu.memory_space<vmem>>, %arg6: memref<1x1xf32, #tpu.memory_space<vmem>>, %arg7: memref<1x1xf32, #tpu.memory_space<vmem>>) attributes {dimension_semantics = [#tpu.dimension_semantics<parallel>, #tpu.dimension_semantics<arbitrary>], iteration_bounds = array<i64: 2, 1>, scalar_prefetch = 0 : i64, scratch_operands = 2 : i64, tpu.core_type = #tpu.core_type<tc>, window_params = [{transform_indices = @transform_0, window_bounds = array<i64: 8, 32>}, {transform_indices = @transform_1, window_bounds = array<i64: 8, 1>}, {pipeline_mode = #tpu.pipeline_mode<synchronous>, transform_indices = @transform_2, window_bounds = array<i64: 1, 32>}, {transform_indices = @transform_3, window_bounds = array<i64: 1, 8, 128>}]} {
    %c0_i32 = arith.constant 0 : i32
    %0 = arith.cmpi eq, %arg1, %c0_i32 : i32
    %1 = arith.extui %0 : i1 to i32
    %c0_i32_0 = arith.constant 0 : i32
    %2 = arith.cmpi ne, %1, %c0_i32_0 : i32
    scf.if %2 {
      %cst_24 = arith.constant 0.000000e+00 : f32
      %60 = vector.broadcast %cst_24 : f32 to vector<1x1xf32>
      %c0_25 = arith.constant 0 : index
      %c0_26 = arith.constant 0 : index
      %61 = vector.load %arg6[%c0_25, %c0_26] : memref<1x1xf32, #tpu.memory_space<vmem>>, vector<1x1xf32>
      tpu.vector_store %arg6[%c0_25, %c0_26], %60 {strides = array<i32>} : memref<1x1xf32, #tpu.memory_space<vmem>>, vector<1x1xf32>,
      %cst_27 = arith.constant 0.000000e+00 : f32
      %62 = vector.broadcast %cst_27 : f32 to vector<1x1xf32>
      %c0_28 = arith.constant 0 : index
      %c0_29 = arith.constant 0 : index
      %63 = vector.load %arg7[%c0_28, %c0_29] : memref<1x1xf32, #tpu.memory_space<vmem>>, vector<1x1xf32>
      tpu.vector_store %arg7[%c0_28, %c0_29], %62 {strides = array<i32>} : memref<1x1xf32, #tpu.memory_space<vmem>>, vector<1x1xf32>,
    } else {
    }
    %c0 = arith.constant 0 : index
    %c0_1 = arith.constant 0 : index
    %3 = vector.load %arg2[%c0, %c0_1] : memref<8x32xf32, #tpu.memory_space<vmem>>, vector<8x32xf32>
    %c0_2 = arith.constant 0 : index
    %c0_3 = arith.constant 0 : index
    %4 = vector.load %arg3[%c0_2, %c0_3] : memref<8x1xi32, #tpu.memory_space<vmem>>, vector<8x1xi32>
    %c0_4 = arith.constant 0 : index
    %c0_5 = arith.constant 0 : index
    %5 = vector.load %arg4[%c0_4, %c0_5] : memref<1x32xf32, #tpu.memory_space<vmem>>, vector<1x32xf32>
    %6 = tpu.iota {dimensions = array<i32: 1>} : vector<8x32xi32>
    %7 = vector.broadcast %4 : vector<8x1xi32> to vector<8x32xi32>
    %8 = arith.cmpi eq, %6, %7 : vector<8x32xi32>
    %cst = arith.constant dense<0xFF800000> : vector<8xf32>
    %9 = vector.multi_reduction <maximumf>, %3, %cst [1] : vector<8x32xf32> to vector<8xf32>
    %10 = vector.shape_cast %9 : vector<8xf32> to vector<8x1xf32>
    %11 = vector.broadcast %10 : vector<8x1xf32> to vector<8x32xf32>
    %12 = arith.subf %3, %11 : vector<8x32xf32>
    %13 = math.exp %12 : vector<8x32xf32>
    %cst_6 = arith.constant dense<0.000000e+00> : vector<8xf32>
    %14 = vector.multi_reduction <add>, %13, %cst_6 [1] : vector<8x32xf32> to vector<8xf32>
    %15 = vector.shape_cast %14 : vector<8xf32> to vector<8x1xf32>
    %16 = math.log %15 : vector<8x1xf32>
    %17 = arith.addf %10, %16 : vector<8x1xf32>
    %c1_i32 = arith.constant 1 : i32
    %18 = arith.muli %arg0, %c1_i32 : i32
    %19 = arith.addi %18, %arg1 : i32
    %c8_i32 = arith.constant 8 : i32
    %20 = arith.muli %19, %c8_i32 : i32
    %21 = tpu.iota {dimensions = array<i32: 0>} : vector<8x1xi32>
    %22 = vector.broadcast %20 : i32 to vector<8x1xi32>
    %23 = arith.addi %22, %21 : vector<8x1xi32>
    %c8_i32_7 = arith.constant 8 : i32
    %24 = vector.broadcast %c8_i32_7 : i32 to vector<8x1xi32>
    %25 = arith.cmpi slt, %23, %24 : vector<8x1xi32>
    %26 = vector.broadcast %25 : vector<8x1xi1> to vector<8x32xi1>
    %27 = arith.andi %8, %26 : vector<8x32xi1>
    %cst_8 = arith.constant 0.000000e+00 : f32
    %28 = vector.broadcast %cst_8 : f32 to vector<8x1xf32>
    %29 = arith.select %25, %17, %28 : vector<8x1xi1>, vector<8x1xf32>
    %30 = vector.shape_cast %29 : vector<8x1xf32> to vector<1x8x1xf32>
    %cst_9 = arith.constant dense<0.000000e+00> : vector<1xf32>
    %31 = vector.multi_reduction <add>, %30, %cst_9 [1, 2] : vector<1x8x1xf32> to vector<1xf32>
    %32 = vector.shape_cast %31 : vector<1xf32> to vector<1x1x1xf32>
    %33 = vector.extract %32[0, 0, 0] : f32 from vector<1x1x1xf32>
    %cst_10 = arith.constant 0.000000e+00 : f32
    %34 = vector.broadcast %cst_10 : f32 to vector<8x32xf32>
    %35 = arith.select %27, %3, %34 : vector<8x32xi1>, vector<8x32xf32>
    %36 = vector.shape_cast %35 : vector<8x32xf32> to vector<1x8x32xf32>
    %cst_11 = arith.constant dense<0.000000e+00> : vector<1xf32>
    %37 = vector.multi_reduction <add>, %36, %cst_11 [1, 2] : vector<1x8x32xf32> to vector<1xf32>
    %38 = vector.shape_cast %37 : vector<1xf32> to vector<1x1x1xf32>
    %39 = vector.extract %38[0, 0, 0] : f32 from vector<1x1x1xf32>
    %40 = arith.subf %33, %39 : f32
    %cst_12 = arith.constant 0.000000e+00 : f32
    %41 = vector.shape_cast %5 : vector<1x32xf32> to vector<1x32xf32>
    %42 = vector.broadcast %41 : vector<1x32xf32> to vector<8x32xf32>
    %43 = vector.broadcast %cst_12 : f32 to vector<8x32xf32>
    %44 = arith.select %27, %42, %43 : vector<8x32xi1>, vector<8x32xf32>
    %45 = vector.shape_cast %44 : vector<8x32xf32> to vector<1x8x32xf32>
    %cst_13 = arith.constant dense<0.000000e+00> : vector<1xf32>
    %46 = vector.multi_reduction <add>, %45, %cst_13 [1, 2] : vector<1x8x32xf32> to vector<1xf32>
    %47 = vector.shape_cast %46 : vector<1xf32> to vector<1x1x1xf32>
    %48 = vector.extract %47[0, 0, 0] : f32 from vector<1x1x1xf32>
    %c0_14 = arith.constant 0 : index
    %c0_15 = arith.constant 0 : index
    %49 = vector.load %arg6[%c0_14, %c0_15] : memref<1x1xf32, #tpu.memory_space<vmem>>, vector<1x1xf32>
    %50 = vector.broadcast %40 : f32 to vector<1x1xf32>
    %51 = arith.addf %49, %50 : vector<1x1xf32>
    %c0_16 = arith.constant 0 : index
    %c0_17 = arith.constant 0 : index
    %52 = vector.load %arg6[%c0_16, %c0_17] : memref<1x1xf32, #tpu.memory_space<vmem>>, vector<1x1xf32>
    tpu.vector_store %arg6[%c0_16, %c0_17], %51 {strides = array<i32>} : memref<1x1xf32, #tpu.memory_space<vmem>>, vector<1x1xf32>,
    %c0_18 = arith.constant 0 : index
    %c0_19 = arith.constant 0 : index
    %53 = vector.load %arg7[%c0_18, %c0_19] : memref<1x1xf32, #tpu.memory_space<vmem>>, vector<1x1xf32>
    %54 = vector.broadcast %48 : f32 to vector<1x1xf32>
    %55 = arith.addf %53, %54 : vector<1x1xf32>
    %c0_20 = arith.constant 0 : index
    %c0_21 = arith.constant 0 : index
    %56 = vector.load %arg7[%c0_20, %c0_21] : memref<1x1xf32, #tpu.memory_space<vmem>>, vector<1x1xf32>
    tpu.vector_store %arg7[%c0_20, %c0_21], %55 {strides = array<i32>} : memref<1x1xf32, #tpu.memory_space<vmem>>, vector<1x1xf32>,
    %c0_i32_22 = arith.constant 0 : i32
    %57 = arith.cmpi eq, %arg1, %c0_i32_22 : i32
    %58 = arith.extui %57 : i1 to i32
    %c0_i32_23 = arith.constant 0 : i32
    %59 = arith.cmpi ne, %58, %c0_i32_23 : i32
    scf.if %59 {
      %60 = tpu.iota {dimensions = array<i32: 0>} : vector<8x128xi32>
      %61 = tpu.iota {dimensions = array<i32: 1>} : vector<8x128xi32>
      %c0_i32_24 = arith.constant 0 : i32
      %62 = vector.broadcast %c0_i32_24 : i32 to vector<8x128xi32>
      %63 = arith.cmpi eq, %60, %62 : vector<8x128xi32>
      %c0_i32_25 = arith.constant 0 : i32
      %64 = vector.broadcast %c0_i32_25 : i32 to vector<8x128xi32>
      %65 = arith.cmpi eq, %61, %64 : vector<8x128xi32>
      %66 = arith.andi %63, %65 : vector<8x128xi1>
      %c0_26 = arith.constant 0 : index
      %c0_27 = arith.constant 0 : index
      %67 = vector.load %arg6[%c0_26, %c0_27] : memref<1x1xf32, #tpu.memory_space<vmem>>, vector<1x1xf32>
      %cst_28 = arith.constant 0.000000e+00 : f32
      %68 = vector.shape_cast %67 : vector<1x1xf32> to vector<1x1xf32>
      %69 = vector.broadcast %68 : vector<1x1xf32> to vector<8x128xf32>
      %70 = vector.broadcast %cst_28 : f32 to vector<8x128xf32>
      %71 = arith.select %66, %69, %70 : vector<8x128xi1>, vector<8x128xf32>
      %c0_i32_29 = arith.constant 0 : i32
      %72 = vector.broadcast %c0_i32_29 : i32 to vector<8x128xi32>
      %73 = arith.cmpi eq, %60, %72 : vector<8x128xi32>
      %c1_i32_30 = arith.constant 1 : i32
      %74 = vector.broadcast %c1_i32_30 : i32 to vector<8x128xi32>
      %75 = arith.cmpi eq, %61, %74 : vector<8x128xi32>
      %76 = arith.andi %73, %75 : vector<8x128xi1>
      %c0_31 = arith.constant 0 : index
      %c0_32 = arith.constant 0 : index
      %77 = vector.load %arg7[%c0_31, %c0_32] : memref<1x1xf32, #tpu.memory_space<vmem>>, vector<1x1xf32>
      %78 = vector.shape_cast %77 : vector<1x1xf32> to vector<1x1xf32>
      %79 = vector.broadcast %78 : vector<1x1xf32> to vector<8x128xf32>
      %80 = arith.select %76, %79, %71 : vector<8x128xi1>, vector<8x128xf32>
      %81 = vector.shape_cast %80 : vector<8x128xf32> to vector<1x8x128xf32>
      %c0_33 = arith.constant 0 : index
      %c0_34 = arith.constant 0 : index
      %c0_35 = arith.constant 0 : index
      %82 = vector.load %arg5[%c0_33, %c0_34, %c0_35] : memref<1x8x128xf32, #tpu.memory_space<vmem>>, vector<1x8x128xf32>
      tpu.vector_store %arg5[%c0_33, %c0_34, %c0_35], %81 {strides = array<i32>} : memref<1x8x128xf32, #tpu.memory_space<vmem>>, vector<1x8x128xf32>,
    } else {
    }
    return
  }
  func.func @transform_0(%arg0: i32, %arg1: i32) -> (i32, i32) {
    %c1_i32 = arith.constant 1 : i32
    %0 = arith.muli %arg0, %c1_i32 : i32
    %1 = arith.addi %0, %arg1 : i32
    %c0_i32 = arith.constant 0 : i32
    %2 = arith.minsi %1, %c0_i32 : i32
    %c0_i32_0 = arith.constant 0 : i32
    %c0_i32_1 = arith.constant 0 : i32
    return %2, %c0_i32_0 : i32, i32
  }
  func.func @transform_1(%arg0: i32, %arg1: i32) -> (i32, i32) {
    %c1_i32 = arith.constant 1 : i32
    %0 = arith.muli %arg0, %c1_i32 : i32
    %1 = arith.addi %0, %arg1 : i32
    %c0_i32 = arith.constant 0 : i32
    %2 = arith.minsi %1, %c0_i32 : i32
    %c0_i32_0 = arith.constant 0 : i32
    %c0_i32_1 = arith.constant 0 : i32
    return %2, %c0_i32_0 : i32, i32
  }
  func.func @transform_2(%arg0: i32, %arg1: i32) -> (i32, i32) {
    %c0_i32 = arith.constant 0 : i32
    %c0_i32_0 = arith.constant 0 : i32
    %c0_i32_1 = arith.constant 0 : i32
    return %c0_i32, %c0_i32_0 : i32, i32
  }
  func.func @transform_3(%arg0: i32, %arg1: i32) -> (i32, i32, i32) {
    %c0_i32 = arith.constant 0 : i32
    %c0_i32_0 = arith.constant 0 : i32
    %c0_i32_1 = arith.constant 0 : i32
    return %arg0, %c0_i32, %c0_i32_0 : i32, i32, i32
  }
}

</mosaic_0001>

<llo_original>
// kernel: tpu_custom_call.1
$region0: #{tpu_custom_call.1}
  #allocation0 [shape = 'u32[]', space=smem, size = 0x4, offset = 0x4, fixed_abs, tag = 'smem constant byte address 0x4 - core index']
  #allocation1 [shape = 'u32[144,128]{1,0:T(1,128)}', space=vmem, size = 0x12000, scoped, tag = 'internal scratch']
  #allocation2 [shape = 'f32[1,1]{1,0:T(1,128)}', space=vmem, size = 0x200, scoped, tag = 'scratch operand']
  #allocation3 [shape = 'f32[1,1]{1,0:T(1,128)}', space=vmem, size = 0x200, scoped, tag = 'scratch operand']
  %s0 = inlined_call_operand.vmem [shape: f32[8,32], index: 0, kind: input, shape index: {}]
  %s1 = inlined_call_operand.vmem [shape: s32[8,1], index: 1, kind: input, shape index: {}]
  %s2 = inlined_call_operand.vmem [shape: f32[1,32], index: 2, kind: input, shape index: {}]
  %s3 = inlined_call_operand.hbm [shape: f32[2,8,128], index: 3, kind: output, shape index: {}]
  %s4 = sld [smem:[#allocation0]]
  $region53: #{tpu_custom_call.1} parent=0
    _
  %s6 = ssub.s32 1, %s4
  %s7 = scalar_select 0, %s6, %s4
  $region1: #{tpu_custom_call.1} parent=0
    #allocation4 [shape = 'u8[8192]{0}', space=vmem, size = 0x2000, scoped, tag = 'output window, operand 0']
    #allocation5 [shape = 's32[2]{0}', space=sflag, size = 0x8, scoped, tag = 'scoped memory for tpu_custom_call.1']
    %8 = vsyncpa [#allocation5], 0
    %s9 = scalar_lea.sflag [#allocation5], 1
    %10 = vsyncpa %s9, 0
    loop: start=0, step=1, limit=4
    $region2: #{tpu_custom_call.1} parent=1 // loop_pre_header
      _
    $region3: #{tpu_custom_call.1} parent=1 // loop_header
      %s12 = sphi 0, %s16
      %p13 = scmp.ge.s32.totalorder %s12, 4
      %s19 = sphi 0, %s31
      %s20 = sphi 0, %s27
      %s21 = sphi 0, %s19
      %s22 = sphi 0, %s20
      %s23 = sphi 0, %s21
      %s24 = sphi 0, %s22
      %s40 = sphi 0, %s42
      %s43 = sphi 0, %s40
      %s44 = sphi 0, %s43
      %s60 = sphi 0, %s44
      %s72 = sphi 0, %s74
      %s75 = sphi 0, %s72
      %s76 = sphi 0, %s75
      %s92 = sphi 0, %s76
      %s96 = sphi 0, %s96
      %s98 = sphi 0, %s96
      %s99 = sphi 0, %s98
      %s113 = sphi 0, %s99
      %s119 = sphi 0, %s121
      %s122 = sphi 0, %s119
      %s123 = sphi 0, %s122
      %s139 = sphi 0, %s123
    $region4: #{tpu_custom_call.1} parent=1 // loop_header_branch
      %15 = sbr.rel (%p13) target = $region8
    $region5: #{tpu_custom_call.1} parent=1 // loop_body
      %s17 = ssub.s32 %s12, 1
      %s18 = ssub.s32 %s12, 2
      %s25 = sadd.s32 1, %s20
      %p26 = scmp.ge.s32.totalorder %s25, 1
      %s27 = scalar_select %p26, 0, %s25
      %s28 = sadd.s32 1, %s19
      %s29 = scalar_select %p26, %s28, %s19
      %p30 = scmp.ge.s32.totalorder %s29, 2
      %s31 = scalar_select %p30, 0, %s29
      %s32 = sadd.s32 %s19, %s20
      %p33 = scmp.lt.s32.totalorder %s32, 0
      %s34 = scalar_select %p33, %s32, 0
      %s35 = sadd.s32 %s31, %s27
      %p36 = scmp.lt.s32.totalorder %s35, 0
      %s37 = scalar_select %p36, %s35, 0
      %s38 = ssub.s32 %s34, %s37
      %p39 = scmp.eq.s32.totalorder %s38, 0
      %s41 = sadd.s32 %s40, 1
      %s42 = scalar_select %p39, %s40, %s41
      %p45 = pneg %p39
      %p46 = scmp.eq.s32.totalorder %s12, 1
      %p47 = por %p45, %p46
      %p48 = scmp.ne.s32.totalorder %s40, %s43
      %p49 = scmp.eq.s32.totalorder %s12, 0
      %p50 = por %p48, %p49
      %p51 = scmp.ne.s32.totalorder %s40, %s43
      %p52 = scmp.eq.s32.totalorder %s17, 1
      %p53 = por %p51, %p52
      %p54 = scmp.ne.s32.totalorder %s43, %s44
      %p55 = scmp.eq.s32.totalorder %s17, 0
      %p56 = por %p54, %p55
      %p57 = scmp.ne.s32.totalorder %s43, %s44
      %p58 = scmp.eq.s32.totalorder %s18, 1
      %p59 = por %p57, %p58
      %p61 = scmp.ne.s32.totalorder %s44, %s60
      %p62 = scmp.eq.s32.totalorder %s18, 0
      %p63 = por %p61, %p62
      %s64 = sadd.s32 %s19, %s20
      %p65 = scmp.lt.s32.totalorder %s64, 0
      %s66 = scalar_select %p65, %s64, 0
      %s67 = sadd.s32 %s31, %s27
      %p68 = scmp.lt.s32.totalorder %s67, 0
      %s69 = scalar_select %p68, %s67, 0
      %s70 = ssub.s32 %s66, %s69
      %p71 = scmp.eq.s32.totalorder %s70, 0
      %s73 = sadd.s32 %s72, 1
      %s74 = scalar_select %p71, %s72, %s73
      %p77 = pneg %p71
      %p78 = scmp.eq.s32.totalorder %s12, 1
      %p79 = por %p77, %p78
      %p80 = scmp.ne.s32.totalorder %s72, %s75
      %p81 = scmp.eq.s32.totalorder %s12, 0
      %p82 = por %p80, %p81
      %p83 = scmp.ne.s32.totalorder %s72, %s75
      %p84 = scmp.eq.s32.totalorder %s17, 1
      %p85 = por %p83, %p84
      %p86 = scmp.ne.s32.totalorder %s75, %s76
      %p87 = scmp.eq.s32.totalorder %s17, 0
      %p88 = por %p86, %p87
      %p89 = scmp.ne.s32.totalorder %s75, %s76
      %p90 = scmp.eq.s32.totalorder %s18, 1
      %p91 = por %p89, %p90
      %p93 = scmp.ne.s32.totalorder %s76, %s92
      %p94 = scmp.eq.s32.totalorder %s18, 0
      %p95 = por %p93, %p94
      %s97 = sadd.s32 %s96, 1
      %p100 = scmp.eq.s32.totalorder %s12, 1
      %p101 = scmp.ne.s32.totalorder %s96, %s98
      %p102 = scmp.eq.s32.totalorder %s12, 0
      %p103 = por %p101, %p102
      %p104 = scmp.ne.s32.totalorder %s96, %s98
      %p105 = scmp.eq.s32.totalorder %s17, 1
      %p106 = por %p104, %p105
      %p107 = scmp.ne.s32.totalorder %s98, %s99
      %p108 = scmp.eq.s32.totalorder %s17, 0
      %p109 = por %p107, %p108
      %p110 = scmp.ne.s32.totalorder %s98, %s99
      %p111 = scmp.eq.s32.totalorder %s18, 1
      %p112 = por %p110, %p111
      %p114 = scmp.ne.s32.totalorder %s99, %s113
      %p115 = scmp.eq.s32.totalorder %s18, 0
      %p116 = por %p114, %p115
      %s117 = ssub.s32 %s19, %s31
      %p118 = scmp.eq.s32.totalorder %s117, 0
      %s120 = sadd.s32 %s119, 1
      %s121 = scalar_select %p118, %s119, %s120
      %p124 = pneg %p118
      %p125 = scmp.eq.s32.totalorder %s12, 1
      %p126 = por %p124, %p125
      %p127 = scmp.ne.s32.totalorder %s119, %s122
      %p128 = scmp.eq.s32.totalorder %s12, 0
      %p129 = por %p127, %p128
      %p130 = scmp.ne.s32.totalorder %s119, %s122
      %p131 = scmp.eq.s32.totalorder %s17, 1
      %p132 = por %p130, %p131
      %p133 = scmp.ne.s32.totalorder %s122, %s123
      %p134 = scmp.eq.s32.totalorder %s17, 0
      %p135 = por %p133, %p134
      %p136 = scmp.ne.s32.totalorder %s122, %s123
      %p137 = scmp.eq.s32.totalorder %s18, 1
      %p138 = por %p136, %p137
      %p140 = scmp.ne.s32.totalorder %s123, %s139
      %p141 = scmp.eq.s32.totalorder %s18, 0
      %p142 = por %p140, %p141
      %p143 = scmp.le.s32.totalorder 1, %s12
      %p144 = scmp.lt.s32.totalorder %s12, 3
      %p145 = pnand %p143, %p144
      %p146 = pneg %p145
      // Predicated region
      $region9: #{tpu_custom_call.1} parent=5 // pred_check
        _
      $region10: #{tpu_custom_call.1} parent=5 // pred_check_branch
        %148 = sbr.rel (%p145) target = $region12
      $region11: #{tpu_custom_call.1} parent=5 // pred_region
        %s149 = ssub.s32 %s12, 1
        // Predicated region
        $region13: #{tpu_custom_call.1} parent=11 // pred_check
          %p150 = pneg %p109
        $region14: #{tpu_custom_call.1} parent=11 // pred_check_branch
          %152 = sbr.rel (%p150) target = $region16
        $region15: #{tpu_custom_call.1} parent=11 // pred_region
          _
        $region16: #{tpu_custom_call.1} parent=11 // pred_fallthru
          _
      $region12: #{tpu_custom_call.1} parent=5 // pred_fallthru
        _
      %p153 = scmp.lt.s32.totalorder %s12, 2
      // Predicated region
      $region17: #{tpu_custom_call.1} parent=5 // pred_check
        %p154 = pneg %p153
      $region18: #{tpu_custom_call.1} parent=5 // pred_check_branch
        %156 = sbr.rel (%p154) target = $region20
      $region19: #{tpu_custom_call.1} parent=5 // pred_region
        // Predicated region
        $region21: #{tpu_custom_call.1} parent=19 // pred_check
          %p157 = pneg %p50
        $region22: #{tpu_custom_call.1} parent=19 // pred_check_branch
          %159 = sbr.rel (%p157) target = $region24
        $region23: #{tpu_custom_call.1} parent=19 // pred_region
          %s160 = sadd.s32 %s19, %s20
          %p161 = scmp.lt.s32.totalorder %s160, 0
          %s162 = scalar_select %p161, %s160, 0
          %p163 = scmp.lt.s32.totalorder %s162, 0
          %s164 = scalar_select %p163, %s162, 0
          %s165 = smul.addr %s164, 8
          %s166 = scalar_lea.vmem %s0, %s165
          %s167 = sadd.s32 %s19, %s20
          %p168 = scmp.lt.s32.totalorder %s167, 0
          %s169 = scalar_select %p168, %s167, 0
        $region24: #{tpu_custom_call.1} parent=19 // pred_fallthru
          _
        // Predicated region
        $region25: #{tpu_custom_call.1} parent=19 // pred_check
          %p170 = pneg %p82
        $region26: #{tpu_custom_call.1} parent=19 // pred_check_branch
          %172 = sbr.rel (%p170) target = $region28
        $region27: #{tpu_custom_call.1} parent=19 // pred_region
          %s173 = sadd.s32 %s19, %s20
          %p174 = scmp.lt.s32.totalorder %s173, 0
          %s175 = scalar_select %p174, %s173, 0
          %p176 = scmp.lt.s32.totalorder %s175, 0
          %s177 = scalar_select %p176, %s175, 0
          %s178 = smul.addr %s177, 8
          %s179 = scalar_lea.vmem %s1, %s178
          %s180 = sadd.s32 %s19, %s20
          %p181 = scmp.lt.s32.totalorder %s180, 0
          %s182 = scalar_select %p181, %s180, 0
        $region28: #{tpu_custom_call.1} parent=19 // pred_fallthru
          _
      $region20: #{tpu_custom_call.1} parent=5 // pred_fallthru
        _
      %p183 = scmp.le.s32.totalorder 1, %s12
      %p184 = scmp.lt.s32.totalorder %s12, 3
      %p185 = pnand %p183, %p184
      %p186 = pneg %p185
      // Predicated region
      $region29: #{tpu_custom_call.1} parent=5 // pred_check
        _
      $region30: #{tpu_custom_call.1} parent=5 // pred_check_branch
        %188 = sbr.rel (%p185) target = $region32
      $region31: #{tpu_custom_call.1} parent=5 // pred_region
        %s189 = ssub.s32 %s12, 1
        %s190 = sadd.s32 %s21, %s22
        %p191 = scmp.lt.s32.totalorder %s190, 0
        %s192 = scalar_select %p191, %s190, 0
        %p193 = scmp.lt.s32.totalorder %s192, 0
        %s194 = scalar_select %p193, %s192, 0
        %s195 = smul.addr %s194, 8
        %s196 = scalar_lea.vmem %s0, %s195
        %p197 = pneg %p56
        %p198 = pneg %p53
        %s199 = sadd.s32 %s21, %s22
        %p200 = scmp.lt.s32.totalorder %s199, 0
        %s201 = scalar_select %p200, %s199, 0
        %p202 = scmp.lt.s32.totalorder %s201, 0
        %s203 = scalar_select %p202, %s201, 0
        %s204 = smul.addr %s203, 8
        %s205 = scalar_lea.vmem %s1, %s204
        %p206 = pneg %p88
        %p207 = pneg %p85
        %p208 = pneg %p109
        %p209 = pneg %p106
        %p210 = pneg %p135
        %p211 = pneg %p132
        %s212 = sand.u32 %s122, 1
        %s213 = scalar_lea.sflag [#allocation5], %s212
        %s214 = sand.u32 %s122, 1
        %s215 = smul.addr %s214, 8
        %s216 = scalar_lea.vmem [#allocation4], %s215
        %s217 = sadd.s32 %s21, %s22
        %p218 = scmp.lt.s32.totalorder %s217, 0
        %s219 = scalar_select %p218, %s217, 0
        %p220 = scmp.lt.s32.totalorder %s219, 0
        %s221 = scalar_select %p220, %s219, 0
        %s222 = smul.addr %s221, 8
        %s223 = scalar_lea.vmem %s0, %s222
        %s224 = sadd.s32 %s21, %s22
        %p225 = scmp.lt.s32.totalorder %s224, 0
        %s226 = scalar_select %p225, %s224, 0
        %s227 = sadd.s32 %s21, %s22
        %p228 = scmp.lt.s32.totalorder %s227, 0
        %s229 = scalar_select %p228, %s227, 0
        %p230 = scmp.lt.s32.totalorder %s229, 0
        %s231 = scalar_select %p230, %s229, 0
        %s232 = smul.addr %s231, 8
        %s233 = scalar_lea.vmem %s1, %s232
        %s234 = sadd.s32 %s21, %s22
        %p235 = scmp.lt.s32.totalorder %s234, 0
        %s236 = scalar_select %p235, %s234, 0
        %p237 = scmp.eq.s32.totalorder %s22, 0
        // Predicated region
        $region33: #{tpu_custom_call.1} parent=31 // pred_check
          %p238 = pneg %p237
        $region34: #{tpu_custom_call.1} parent=31 // pred_check_branch
          %240 = sbr.rel (%p238) target = $region36
        $region35: #{tpu_custom_call.1} parent=31 // pred_region
          %vm241 = vcmask 0
          %242 = vst.msk [vmem:[#allocation2] sm:$0x1] %vm241, 0.0
          %243 = vst.msk [vmem:[#allocation3] sm:$0x1] %vm241, 0.0
        $region36: #{tpu_custom_call.1} parent=31 // pred_fallthru
          _
        %v244 = vld [vmem:[%s223] sm:$0xff]
        %v245 = vld [vmem:[%s233] sm:$0xff]
        %v246 = vld [vmem:[%s2] sm:$0x1]
        %v247 = vlaneseq
        %v248 = vand.u32 %v247, 127
        %249 = vset.pattern.permute.xlu0 0
        %250 = vperm.xlu0 %249, %v245
        %v251 = vpop.permute.xlu0 %250
        %vm252 = vcmp.eq.s32.totalorder %v248, %v251
        %vm253 = vcmask 261120
        %v254 = vsel %vm253, %v244, -inf
        %255 = vmax.xlane.f32.xlu0 %v254
        %v256 = vpop.xlane.xlu0 %255
        %v257 = vsub.f32 %v244, %v256
        %v258 = vmul.f32 %v257, 1.442695
        %v259 = vpow.pop %v258
        %v260 = vsel %vm253, %v259, 0.0
        %261 = vadd.xlane.f32.xlu0 %v260
        %v262 = vpop.xlane.xlu0 %261
        %v263 = vlog2.pop %v262
        %v264 = vmul.f32 %v263, 0.6931472
        %v265 = vadd.f32 %v256, %v264
        %s266 = sadd.s32 %s21, %s22
        %s267 = smul.u32 %s266, 8
        %v268 = vlaneseq
        %v269 = vshrl.u32 %v268, 7
        %v270 = vstv %s267
        %v271 = vadd.s32 %v270, %v269
        %vm272 = vcmp.lt.s32.totalorder %v271, 8
        %v273 = vsel %vm272, 1, 0
        %vm274 = vcmp.eq.s32.totalorder %v273, 1
        %vm275 = vmand %vm252, %vm274
        %v276 = vsel %vm272, %v265, 0.0
        %vm277 = vcmask 7168
        %v278 = vsel %vm277, %v276, 0.0
        %279 = vadd.xlane.f32.xlu0 %v278
        %v280 = vpop.xlane.xlu0 %279
        %v281 = vrot.slane %v280, 4
        %v282 = vadd.f32 %v280, %v281
        %v283 = vrot.slane %v282, 2
        %v284 = vadd.f32 %v282, %v283
        %v285 = vrot.slane %v284, 1
        %v286 = vadd.f32 %v284, %v285
        %s287 = vtos %v286
        %v288 = vsel %vm275, %v244, 0.0
        %v289 = vsel %vm253, %v288, 0.0
        %290 = vadd.xlane.f32.xlu0 %v289
        %v291 = vpop.xlane.xlu0 %290
        %v292 = vrot.slane %v291, 4
        %v293 = vadd.f32 %v291, %v292
        %v294 = vrot.slane %v293, 2
        %v295 = vadd.f32 %v293, %v294
        %v296 = vrot.slane %v295, 1
        %v297 = vadd.f32 %v295, %v296
        %s298 = vtos %v297
        %s299 = ssub.f32 %s287, %s298
        %v301 = vlaneseq
        %v302 = vshrl.u32 %v301, 7
        %v303 = vsub.s32 0, %v302
        %v304 = vrot.slane %v246, %v303
        %v306 = vsel %vm275, %v304, 0.0
        %v307 = vsel %vm253, %v306, 0.0
        %308 = vadd.xlane.f32.xlu0 %v307
        %v309 = vpop.xlane.xlu0 %308
        %v310 = vrot.slane %v309, 4
        %v311 = vadd.f32 %v309, %v310
        %v312 = vrot.slane %v311, 2
        %v313 = vadd.f32 %v311, %v312
        %v314 = vrot.slane %v313, 1
        %v315 = vadd.f32 %v313, %v314
        %s316 = vtos %v315
        %v317 = vld [vmem:[#allocation2] sm:$0x1]
        %v318 = vstv %s299
        %v319 = vadd.f32 %v317, %v318
        %vm320 = vcmask 0
        %321 = vst.msk [vmem:[#allocation2] sm:$0x1] %vm320, %v319
        %v322 = vld [vmem:[#allocation3] sm:$0x1]
        %v323 = vstv %s316
        %v324 = vadd.f32 %v322, %v323
        %325 = vst.msk [vmem:[#allocation3] sm:$0x1] %vm320, %v324
        // Predicated region
        $region37: #{tpu_custom_call.1} parent=31 // pred_check
          %p326 = pneg %p237
        $region38: #{tpu_custom_call.1} parent=31 // pred_check_branch
          %328 = sbr.rel (%p326) target = $region40
        $region39: #{tpu_custom_call.1} parent=31 // pred_region
          %vm329 = vcmp.eq.s32.totalorder %v269, 0
          %vm330 = vcmp.eq.s32.totalorder %v248, 0
          %vm331 = vmand %vm329, %vm330
          %v332 = vld [vmem:[#allocation2] sm:$0x1]
          %v334 = vlaneseq
          %v335 = vshrl.u32 %v334, 7
          %v336 = vsub.s32 0, %v335
          %v337 = vrot.slane %v332, %v336
          %338 = vset.pattern.permute.xlu0 0
          %339 = vperm.xlu0 %338, %v337
          %v340 = vpop.permute.xlu0 %339
          %v342 = vsel %vm331, %v340, 0.0
          %vm343 = vcmp.eq.s32.totalorder %v248, 1
          %vm344 = vmand %vm329, %vm343
          %v345 = vld [vmem:[#allocation3] sm:$0x1]
          %v347 = vlaneseq
          %v348 = vshrl.u32 %v347, 7
          %v349 = vsub.s32 0, %v348
          %v350 = vrot.slane %v345, %v349
          %351 = vset.pattern.permute.xlu0 0
          %352 = vperm.xlu0 %351, %v350
          %v353 = vpop.permute.xlu0 %352
          %v355 = vsel %vm344, %v353, %v342
          %356 = vst [vmem:[%s216] sm:$0xff] %v355
        $region40: #{tpu_custom_call.1} parent=31 // pred_fallthru
          _
        %s357 = sand.u32 %s122, 1
        %s358 = scalar_lea.sflag [#allocation5], %s357
        %s359 = sand.u32 %s122, 1
        %s360 = smul.addr %s359, 8
        %s361 = scalar_lea.vmem [#allocation4], %s360
        // Predicated region
        $region41: #{tpu_custom_call.1} parent=31 // pred_check
          %p362 = pneg %p132
        $region42: #{tpu_custom_call.1} parent=31 // pred_check_branch
          %364 = sbr.rel (%p362) target = $region44
        $region43: #{tpu_custom_call.1} parent=31 // pred_region
          %s366 = ssub.s32 128, 128
          %367 = vsyncadd %s358, %s366
          %s368 = smul.addr %s21, 128
          %s369 = scalar_lea.hbm %s3, %s368
          %s371 = sshll.u32 %s361, 4
          %s372 = int_to_ptr.vmem [resolvable:$true] %s371
          %374 = dma.vmem_to_hbm [thread:$0]  %s372, 128, %s369, %s358
        $region44: #{tpu_custom_call.1} parent=31 // pred_fallthru
          _
      $region32: #{tpu_custom_call.1} parent=5 // pred_fallthru
        _
      %p375 = scmp.le.s32.totalorder 2, %s12
      // Predicated region
      $region45: #{tpu_custom_call.1} parent=5 // pred_check
        %p376 = pneg %p375
      $region46: #{tpu_custom_call.1} parent=5 // pred_check_branch
        %378 = sbr.rel (%p376) target = $region48
      $region47: #{tpu_custom_call.1} parent=5 // pred_region
        %s379 = ssub.s32 %s12, 2
        // Predicated region
        $region49: #{tpu_custom_call.1} parent=47 // pred_check
          %p380 = pneg %p138
        $region50: #{tpu_custom_call.1} parent=47 // pred_check_branch
          %382 = sbr.rel (%p380) target = $region52
        $region51: #{tpu_custom_call.1} parent=47 // pred_region
          %s383 = sand.u32 %s123, 1
          %s384 = scalar_lea.sflag [#allocation5], %s383
          %s385 = sand.u32 %s123, 1
          %s386 = smul.addr %s385, 8
          %s387 = scalar_lea.vmem [#allocation4], %s386
          %388 = dma.done %s384, 128
        $region52: #{tpu_custom_call.1} parent=47 // pred_fallthru
          _
      $region48: #{tpu_custom_call.1} parent=5 // pred_fallthru
        _
    $region6: #{tpu_custom_call.1} parent=1 // loop_footer
      %s16 = sadd.s32 1, %s12
    $region7: #{tpu_custom_call.1} parent=1 // loop_footer_branch
      %11 = sbr.rel target = $region3
    $region8: #{tpu_custom_call.1} parent=1 // loop_exit
      _
    %389 = vsyncpa [#allocation5], 1
    %s390 = scalar_lea.sflag [#allocation5], 1
    %391 = vsyncpa %s390, 1

</llo_original>
